<compile_context>
chip_gen: v7x
topology: tpu7x:2x2x1
jax: 0.10.0
libtpu: 0.0.40
codegen_flags: <defaults>
</compile_context>

<pallas_src>
import jax
import jax.numpy as jnp
from jax.experimental import pallas as pl
from jax.experimental.pallas import tpu as pltpu


# ----------------------------------------------------------------------------
# Kernel: one grid step = one timestep of one batch tile.
# ----------------------------------------------------------------------------
def _gru_seq_kernel(x_ref, h0_ref, wih_ref, whh_ref, b_ref, o_ref, h_sc):
    """x_ref: (1, TB, I); h0_ref: (TB, H) f32; wih_ref: (I, 3H); whh_ref: (H, 3H);
    b_ref: (1, 4H) f32 = [b_r(sum) | b_z(sum) | b_ih_n | b_hh_n];
    o_ref: (1, TB, 4H) = cat([r, z, n, new_h]); h_sc: (TB, H) f32 carry."""
    H = o_ref.shape[2] // 4
    t = pl.program_id(1)

    # Load the initial hidden state (last H columns, sliced in the wrapper)
    # into the resident f32 carry at the first timestep of this batch tile.
    @pl.when(t == 0)
    def _():
        h_sc[...] = h0_ref[...].astype(jnp.float32)

    h = h_sc[...]                                      # f32 carry
    w_dt = whh_ref.dtype

    # Two MXU matmuls, f32 accumulation (no zero-padded bands).
    px = jnp.dot(x_ref[0], wih_ref[...], preferred_element_type=jnp.float32)
    ph = jnp.dot(h.astype(w_dt), whh_ref[...], preferred_element_type=jnp.float32)
    b = b_ref[...].astype(jnp.float32)

    # Gate tail in f32 on the VPU/EUP.
    rz = jax.nn.sigmoid(px[:, 0:2 * H] + ph[:, 0:2 * H] + b[:, 0:2 * H])
    r = rz[:, 0:H]
    z = rz[:, H:2 * H]
    n = jnp.tanh(px[:, 2 * H:3 * H] + b[:, 2 * H:3 * H]
                 + r * (ph[:, 2 * H:3 * H] + b[:, 3 * H:4 * H]))
    new_h = (1.0 - z) * n + z * h

    h_sc[...] = new_h                                  # f32 carry for step t+1

    if H % 128 == 0:
        # Lane-aligned: write the four gate slabs directly (unmasked stores).
        o_ref[0, :, 0:H] = r.astype(o_ref.dtype)
        o_ref[0, :, H:2 * H] = z.astype(o_ref.dtype)
        o_ref[0, :, 2 * H:3 * H] = n.astype(o_ref.dtype)
        o_ref[0, :, 3 * H:4 * H] = new_h.astype(o_ref.dtype)
    else:
        # Small / unaligned H: one contiguous (TB, 4H) store.
        o_ref[0] = jnp.concatenate([r, z, n, new_h], axis=1).astype(o_ref.dtype)


# ----------------------------------------------------------------------------
# Hoisted parameter packing (call ONCE at model init / outside any scan).
# ----------------------------------------------------------------------------
def prepare_gru_params(w_ih, w_hh, b_ih, b_hh, hidden_size, compute_dtype=None):
    """w_ih: (3H, I); w_hh: (3H, H); b_ih, b_hh: (3H,)  (PyTorch layout, gates r,z,n).

    Returns:
      wih_t: (I, 3H), whh_t: (H, 3H) in compute_dtype (no zero padding)
      b_cat: (1, 4H) f32 = [b_ih_r+b_hh_r | b_ih_z+b_hh_z | b_ih_n | b_hh_n]
    """
    H = hidden_size
    dt = compute_dtype if compute_dtype is not None else w_ih.dtype
    wih_t = jnp.transpose(w_ih).astype(dt)             # (I, 3H)
    whh_t = jnp.transpose(w_hh).astype(dt)             # (H, 3H)
    b_cat = jnp.concatenate([
        b_ih[0:2 * H] + b_hh[0:2 * H],                  # pre-summed r/z biases
        b_ih[2 * H:3 * H],                              # n_i bias
        b_hh[2 * H:3 * H],                              # n_h bias (scaled by r in kernel)
    ]).reshape(1, 4 * H).astype(jnp.float32)
    return wih_t, whh_t, b_cat


def _vmem_capacity_bytes():
    try:
        cap = getattr(pltpu.get_tpu_info(), "vmem_capacity_bytes", None)
        if cap:
            return int(cap)
    except Exception:
        pass
    return 64 * 1024 * 1024   # conservative default (v7x-sized)


# ----------------------------------------------------------------------------
# Sequence entry point: T GRU steps in one pallas_call, weights resident.
# ----------------------------------------------------------------------------
def gru_sequence_with_gates(x_seq, hidden_state, wih_t, whh_t, b_cat, hidden_size,
                            *, batch_tile=256, out_dtype=None):
    """x_seq: (T, B, I); hidden_state: (B, >=H) -- only the last H columns are used.

    Returns gates: (T, B, 4H) = cat([r_t, z_t, n_t, h_t], axis=-1) per step, where
    h_t is fed back as the hidden state of step t+1 (== looping the PyTorch module)."""
    T, B, I = x_seq.shape
    H = hidden_size
    G = 4 * H
    cdt = wih_t.dtype
    out_dtype = out_dtype if out_dtype is not None else x_seq.dtype

    h0 = hidden_state[:, -H:].astype(jnp.float32)       # f32 initial carry
    x_seq = x_seq.astype(cdt)

    # ---- batch tile selection ---------------------------------------------
    itemsize = jnp.dtype(cdt).itemsize
    o_item = jnp.dtype(out_dtype).itemsize
    sub = {4: 8, 2: 16, 1: 32}.get(itemsize, 8)
    if B <= 2 * sub:
        TB = B                                           # single full-array block
    else:
        TB = min(batch_tile, B)
        TB = max(sub, (TB // sub) * sub)                 # sublane-aligned
        # >=2 batch tiles so a v7x megacore can shard the "parallel" axis.
        half = ((B + 1) // 2 + sub - 1) // sub * sub
        TB = max(sub, min(TB, half))

    # ---- VMEM budget (weights single-buffered, x/out double-buffered,
    #      plus in-kernel f32 temporaries and the carry) ---------------------
    w_bytes = (I * 3 * H + H * 3 * H) * itemsize + 4 * H * 4

    def need(tb):
        act = 2 * (tb * I * itemsize + tb * H * 4) + 2 * tb * G * o_item
        tmp = 16 * tb * H * 4 + tb * H * 4               # f32 temps + carry
        return w_bytes + act + tmp

    cap = _vmem_capacity_bytes()
    budget = cap * 3 // 4                                # never exceed the chip
    while TB > sub and need(TB) > budget:
        TB = max(sub, (TB // 2 // sub) * sub)
    vmem_limit = int(min(budget, max(need(TB) + (2 << 20), 16 * 1024 * 1024)))

    nb = pl.cdiv(B, TB)

    cost = pl.CostEstimate(
        flops=int(2 * T * B * (I + H) * 3 * H),
        transcendentals=int(3 * T * B * H),
        bytes_accessed=int(T * B * I * itemsize + B * H * 4
                           + w_bytes + T * B * G * o_item),
    )

    def build(single_buffer_weights):
        w_kw = dict(pipeline_mode=pl.Buffered(1)) if single_buffer_weights else {}
        in_specs = [
            pl.BlockSpec((1, TB, I), lambda i, t: (t, i, 0)),        # x[t] tile
            pl.BlockSpec((TB, H), lambda i, t: (i, 0)),              # h0 tile (f32)
            pl.BlockSpec((I, 3 * H), lambda i, t: (0, 0), **w_kw),   # W_ih^T, resident
            pl.BlockSpec((H, 3 * H), lambda i, t: (0, 0), **w_kw),   # W_hh^T, resident
            pl.BlockSpec((1, 4 * H), lambda i, t: (0, 0), **w_kw),   # biases, resident
        ]
        out_specs = pl.BlockSpec((1, TB, G), lambda i, t: (t, i, 0))
        return pl.pallas_call(
            _gru_seq_kernel,
            out_shape=jax.ShapeDtypeStruct((T, B, G), out_dtype),
            grid_spec=pltpu.PrefetchScalarGridSpec(
                num_scalar_prefetch=0,
                grid=(nb, T),                       # batch outer, time inner
                in_specs=in_specs,
                out_specs=out_specs,
                scratch_shapes=[pltpu.VMEM((TB, H), jnp.float32)],   # f32 h carry
            ),
            compiler_params=pltpu.CompilerParams(
                dimension_semantics=("parallel", "arbitrary"),
                vmem_limit_bytes=vmem_limit,
            ),
            cost_estimate=cost,
        )

    try:
        return build(True)(x_seq, h0, wih_t, whh_t, b_cat)
    except Exception:
        # pipeline_mode=pl.Buffered(1) unsupported on this jax build: use defaults.
        return build(False)(x_seq, h0, wih_t, whh_t, b_cat)


# ----------------------------------------------------------------------------
# Single-step entry point (exact module forward semantics) == T=1 fused path.
# ----------------------------------------------------------------------------
def gru_cell_with_gates(x, hidden_state, wih_t, whh_t, b_cat, hidden_size, **kw):
    """One GRU step: returns cat([r, z, n, new_h], axis=1) of shape (B, 4H)."""
    gates = gru_sequence_with_gates(x[None], hidden_state, wih_t, whh_t, b_cat,
                                    hidden_size, **kw)
    return gates[0]


# ----------------------------------------------------------------------------
# Pure-JAX reference (mirrors the PyTorch module forward).
# ----------------------------------------------------------------------------
def _reference_step(x, hidden_state, w_ih, w_hh, b_ih, b_hh, H):
    h = hidden_state[:, -H:]
    ip = x @ w_ih.T
    hp = h @ w_hh.T
    r = jax.nn.sigmoid(ip[:, :H] + b_ih[:H] + hp[:, :H] + b_hh[:H])
    z = jax.nn.sigmoid(ip[:, H:2 * H] + b_ih[H:2 * H] + hp[:, H:2 * H] + b_hh[H:2 * H])
    n = jnp.tanh(ip[:, 2 * H:] + b_ih[2 * H:] + r * (hp[:, 2 * H:] + b_hh[2 * H:]))
    new_h = (1 - z) * n + z * h
    return jnp.concatenate([r, z, n, new_h], axis=1)


if __name__ == "__main__":
    input_size = 16
    hidden_size = 32
    batch = 4
    extra = 8       # hidden_state wider than hidden_size -> exercises the [:, -H:] slice
    seq_len = 8

    key = jax.random.PRNGKey(0)
    k1, k2, k3, k4, k5, k6, k7 = jax.random.split(key, 7)

    x = jax.random.normal(k1, (batch, input_size), dtype=jnp.float32)
    hidden_state = jax.random.normal(k2, (batch, hidden_size + extra), dtype=jnp.float32)
    w_ih = jax.random.normal(k3, (3 * hidden_size, input_size), dtype=jnp.float32) * 0.1
    w_hh = jax.random.normal(k4, (3 * hidden_size, hidden_size), dtype=jnp.float32) * 0.1
    b_ih = jax.random.normal(k5, (3 * hidden_size,), dtype=jnp.float32)
    b_hh = jax.random.normal(k6, (3 * hidden_size,), dtype=jnp.float32)

    # Hoisted parameter packing (model init / outside any scan).
    # For v6e/v7x pass compute_dtype=jnp.bfloat16 (f32 accumulation + f32 carry kept).
    wih_t, whh_t, b_cat = prepare_gru_params(w_ih, w_hh, b_ih, b_hh, hidden_size,
                                             compute_dtype=jnp.float32)

    # ---- single step: exact module-forward semantics ----
    out = gru_cell_with_gates(x, hidden_state, wih_t, whh_t, b_cat, hidden_size)
    out = jax.block_until_ready(out)
    ref = _reference_step(x, hidden_state, w_ih, w_hh, b_ih, b_hh, hidden_size)
    assert out.shape == (batch, 4 * hidden_size)
    assert jnp.allclose(out, ref, atol=1e-5, rtol=1e-5), "single-step mismatch vs reference"

    # ---- fused multi-step: weights resident across timesteps ----
    x_seq = jax.random.normal(k7, (seq_len, batch, input_size), dtype=jnp.float32)
    gates = gru_sequence_with_gates(x_seq, hidden_state, wih_t, whh_t, b_cat, hidden_size)
    gates = jax.block_until_ready(gates)
    assert gates.shape == (seq_len, batch, 4 * hidden_size)

    h_ref = hidden_state
    for t in range(seq_len):
        ref_t = _reference_step(x_seq[t], h_ref, w_ih, w_hh, b_ih, b_hh, hidden_size)
        assert jnp.allclose(gates[t], ref_t, atol=1e-4, rtol=1e-4), f"sequence mismatch at t={t}"
        h_ref = ref_t[:, 3 * hidden_size:]   # feed new_h back, like looping the module

    print("KERNEL_OK")
</pallas_src>

<mosaic_0001>
module attributes {stable_mosaic.version = 11 : i64} {
  func.func @_gru_seq_kernel(%arg0: i32, %arg1: i32, %arg2: memref<1x4x16xf32, #tpu.memory_space<vmem>>, %arg3: memref<4x32xf32, #tpu.memory_space<vmem>>, %arg4: memref<16x96xf32, #tpu.memory_space<vmem>>, %arg5: memref<32x96xf32, #tpu.memory_space<vmem>>, %arg6: memref<1x128xf32, #tpu.memory_space<vmem>>, %arg7: memref<1x4x128xf32, #tpu.memory_space<vmem>>, %arg8: memref<4x32xf32, #tpu.memory_space<vmem>>) attributes {dimension_semantics = [#tpu.dimension_semantics<parallel>, #tpu.dimension_semantics<arbitrary>], iteration_bounds = array<i64: 1, 1>, scalar_prefetch = 0 : i64, scratch_operands = 1 : i64, tpu.core_type = #tpu.core_type<tc>, window_params = [{transform_indices = @transform_0, window_bounds = array<i64: 1, 4, 16>}, {transform_indices = @transform_1, window_bounds = array<i64: 4, 32>}, {pipeline_mode = #tpu.pipeline_mode<synchronous>, transform_indices = @transform_2, window_bounds = array<i64: 16, 96>}, {pipeline_mode = #tpu.pipeline_mode<synchronous>, transform_indices = @transform_3, window_bounds = array<i64: 32, 96>}, {pipeline_mode = #tpu.pipeline_mode<synchronous>, transform_indices = @transform_4, window_bounds = array<i64: 1, 128>}, {transform_indices = @transform_5, window_bounds = array<i64: 1, 4, 128>}]} {
    %c0_i32 = arith.constant 0 : i32
    %0 = arith.cmpi eq, %arg1, %c0_i32 : i32
    %1 = arith.extui %0 : i1 to i32
    %c0_i32_0 = arith.constant 0 : i32
    %2 = arith.cmpi ne, %1, %c0_i32_0 : i32
    scf.if %2 {
      %c0_19 = arith.constant 0 : index
      %c0_20 = arith.constant 0 : index
      %45 = vector.load %arg3[%c0_19, %c0_20] : memref<4x32xf32, #tpu.memory_space<vmem>>, vector<4x32xf32>
      %c0_21 = arith.constant 0 : index
      %c0_22 = arith.constant 0 : index
      %46 = vector.load %arg8[%c0_21, %c0_22] : memref<4x32xf32, #tpu.memory_space<vmem>>, vector<4x32xf32>
      tpu.vector_store %arg8[%c0_21, %c0_22], %45 {strides = array<i32>} : memref<4x32xf32, #tpu.memory_space<vmem>>, vector<4x32xf32>,
    } else {
    }
    %c0 = arith.constant 0 : index
    %c0_1 = arith.constant 0 : index
    %3 = vector.load %arg8[%c0, %c0_1] : memref<4x32xf32, #tpu.memory_space<vmem>>, vector<4x32xf32>
    %c0_2 = arith.constant 0 : index
    %c0_3 = arith.constant 0 : index
    %c0_4 = arith.constant 0 : index
    %4 = vector.load %arg2[%c0_2, %c0_3, %c0_4] : memref<1x4x16xf32, #tpu.memory_space<vmem>>, vector<1x4x16xf32>
    %5 = vector.shape_cast %4 : vector<1x4x16xf32> to vector<4x16xf32>
    %c0_5 = arith.constant 0 : index
    %c0_6 = arith.constant 0 : index
    %6 = vector.load %arg4[%c0_5, %c0_6] : memref<16x96xf32, #tpu.memory_space<vmem>>, vector<16x96xf32>
    %cst = arith.constant dense<0.000000e+00> : vector<4x96xf32>
    %7 = tpu.matmul %5, %6, %cst {dimension_numbers = #tpu.dot_dimension_numbers<[1], [0], [0], [1], [0, 0, 1, 1], [], []>} : vector<4x16xf32>, vector<16x96xf32>, vector<4x96xf32> -> vector<4x96xf32>
    %c0_7 = arith.constant 0 : index
    %c0_8 = arith.constant 0 : index
    %8 = vector.load %arg5[%c0_7, %c0_8] : memref<32x96xf32, #tpu.memory_space<vmem>>, vector<32x96xf32>
    %cst_9 = arith.constant dense<0.000000e+00> : vector<4x96xf32>
    %9 = tpu.matmul %3, %8, %cst_9 {dimension_numbers = #tpu.dot_dimension_numbers<[1], [0], [0], [1], [0, 0, 1, 1], [], []>} : vector<4x32xf32>, vector<32x96xf32>, vector<4x96xf32> -> vector<4x96xf32>
    %c0_10 = arith.constant 0 : index
    %c0_11 = arith.constant 0 : index
    %10 = vector.load %arg6[%c0_10, %c0_11] : memref<1x128xf32, #tpu.memory_space<vmem>>, vector<1x128xf32>
    %11 = vector.extract_strided_slice %7 {offsets = [0, 0], sizes = [4, 64], strides = [1, 1]} : vector<4x96xf32> to vector<4x64xf32>
    %12 = vector.extract_strided_slice %9 {offsets = [0, 0], sizes = [4, 64], strides = [1, 1]} : vector<4x96xf32> to vector<4x64xf32>
    %13 = arith.addf %11, %12 : vector<4x64xf32>
    %14 = vector.extract_strided_slice %10 {offsets = [0, 0], sizes = [1, 64], strides = [1, 1]} : vector<1x128xf32> to vector<1x64xf32>
    %15 = vector.broadcast %14 : vector<1x64xf32> to vector<4x64xf32>
    %16 = arith.addf %13, %15 : vector<4x64xf32>
    %17 = arith.negf %16 : vector<4x64xf32>
    %18 = math.exp %17 : vector<4x64xf32>
    %cst_12 = arith.constant 1.000000e+00 : f32
    %19 = vector.broadcast %cst_12 : f32 to vector<4x64xf32>
    %20 = arith.addf %19, %18 : vector<4x64xf32>
    %21 = arith.divf %19, %20 : vector<4x64xf32>
    %22 = vector.extract_strided_slice %21 {offsets = [0, 0], sizes = [4, 32], strides = [1, 1]} : vector<4x64xf32> to vector<4x32xf32>
    %23 = vector.extract_strided_slice %21 {offsets = [0, 32], sizes = [4, 32], strides = [1, 1]} : vector<4x64xf32> to vector<4x32xf32>
    %24 = vector.extract_strided_slice %7 {offsets = [0, 64], sizes = [4, 32], strides = [1, 1]} : vector<4x96xf32> to vector<4x32xf32>
    %25 = vector.extract_strided_slice %10 {offsets = [0, 64], sizes = [1, 32], strides = [1, 1]} : vector<1x128xf32> to vector<1x32xf32>
    %26 = vector.broadcast %25 : vector<1x32xf32> to vector<4x32xf32>
    %27 = arith.addf %24, %26 : vector<4x32xf32>
    %28 = vector.extract_strided_slice %9 {offsets = [0, 64], sizes = [4, 32], strides = [1, 1]} : vector<4x96xf32> to vector<4x32xf32>
    %29 = vector.extract_strided_slice %10 {offsets = [0, 96], sizes = [1, 32], strides = [1, 1]} : vector<1x128xf32> to vector<1x32xf32>
    %30 = vector.broadcast %29 : vector<1x32xf32> to vector<4x32xf32>
    %31 = arith.addf %28, %30 : vector<4x32xf32>
    %32 = arith.mulf %22, %31 : vector<4x32xf32>
    %33 = arith.addf %27, %32 : vector<4x32xf32>
    %34 = math.tanh %33 : vector<4x32xf32>
    %cst_13 = arith.constant 1.000000e+00 : f32
    %35 = vector.broadcast %cst_13 : f32 to vector<4x32xf32>
    %36 = arith.subf %35, %23 : vector<4x32xf32>
    %37 = arith.mulf %36, %34 : vector<4x32xf32>
    %38 = arith.mulf %23, %3 : vector<4x32xf32>
    %39 = arith.addf %37, %38 : vector<4x32xf32>
    %c0_14 = arith.constant 0 : index
    %c0_15 = arith.constant 0 : index
    %40 = vector.load %arg8[%c0_14, %c0_15] : memref<4x32xf32, #tpu.memory_space<vmem>>, vector<4x32xf32>
    tpu.vector_store %arg8[%c0_14, %c0_15], %39 {strides = array<i32>} : memref<4x32xf32, #tpu.memory_space<vmem>>, vector<4x32xf32>,
    %41 = tpu.concatenate %22, %23, %34, %39 in 1 : vector<4x32xf32>, vector<4x32xf32>, vector<4x32xf32>, vector<4x32xf32> -> vector<4x128xf32>
    %c0_16 = arith.constant 0 : index
    %c0_17 = arith.constant 0 : index
    %c0_18 = arith.constant 0 : index
    %42 = vector.load %arg7[%c0_16, %c0_17, %c0_18] : memref<1x4x128xf32, #tpu.memory_space<vmem>>, vector<1x4x128xf32>
    %43 = vector.shape_cast %42 : vector<1x4x128xf32> to vector<4x128xf32>
    %44 = vector.shape_cast %41 : vector<4x128xf32> to vector<1x4x128xf32>
    tpu.vector_store %arg7[%c0_16, %c0_17, %c0_18], %44 {strides = array<i32>} : memref<1x4x128xf32, #tpu.memory_space<vmem>>, vector<1x4x128xf32>,
    return
  }
  func.func @transform_0(%arg0: i32, %arg1: i32) -> (i32, i32, i32) {
    %c0_i32 = arith.constant 0 : i32
    %c0_i32_0 = arith.constant 0 : i32
    return %arg1, %arg0, %c0_i32 : i32, i32, i32
  }
  func.func @transform_1(%arg0: i32, %arg1: i32) -> (i32, i32) {
    %c0_i32 = arith.constant 0 : i32
    %c0_i32_0 = arith.constant 0 : i32
    return %arg0, %c0_i32 : i32, i32
  }
  func.func @transform_2(%arg0: i32, %arg1: i32) -> (i32, i32) {
    %c0_i32 = arith.constant 0 : i32
    %c0_i32_0 = arith.constant 0 : i32
    %c0_i32_1 = arith.constant 0 : i32
    return %c0_i32, %c0_i32_0 : i32, i32
  }
  func.func @transform_3(%arg0: i32, %arg1: i32) -> (i32, i32) {
    %c0_i32 = arith.constant 0 : i32
    %c0_i32_0 = arith.constant 0 : i32
    %c0_i32_1 = arith.constant 0 : i32
    return %c0_i32, %c0_i32_0 : i32, i32
  }
  func.func @transform_4(%arg0: i32, %arg1: i32) -> (i32, i32) {
    %c0_i32 = arith.constant 0 : i32
    %c0_i32_0 = arith.constant 0 : i32
    %c0_i32_1 = arith.constant 0 : i32
    return %c0_i32, %c0_i32_0 : i32, i32
  }
  func.func @transform_5(%arg0: i32, %arg1: i32) -> (i32, i32, i32) {
    %c0_i32 = arith.constant 0 : i32
    %c0_i32_0 = arith.constant 0 : i32
    return %arg1, %arg0, %c0_i32 : i32, i32, i32
  }
}

module attributes {stable_mosaic.version = 11 : i64} {
  func.func @_gru_seq_kernel(%arg0: i32, %arg1: i32, %arg2: memref<1x4x16xf32, #tpu.memory_space<vmem>>, %arg3: memref<4x32xf32, #tpu.memory_space<vmem>>, %arg4: memref<16x96xf32, #tpu.memory_space<vmem>>, %arg5: memref<32x96xf32, #tpu.memory_space<vmem>>, %arg6: memref<1x128xf32, #tpu.memory_space<vmem>>, %arg7: memref<1x4x128xf32, #tpu.memory_space<vmem>>, %arg8: memref<4x32xf32, #tpu.memory_space<vmem>>) attributes {dimension_semantics = [#tpu.dimension_semantics<parallel>, #tpu.dimension_semantics<arbitrary>], iteration_bounds = array<i64: 1, 1>, scalar_prefetch = 0 : i64, scratch_operands = 1 : i64, tpu.core_type = #tpu.core_type<tc>, window_params = [{transform_indices = @transform_0, window_bounds = array<i64: 1, 4, 16>}, {transform_indices = @transform_1, window_bounds = array<i64: 4, 32>}, {pipeline_mode = #tpu.pipeline_mode<synchronous>, transform_indices = @transform_2, window_bounds = array<i64: 16, 96>}, {pipeline_mode = #tpu.pipeline_mode<synchronous>, transform_indices = @transform_3, window_bounds = array<i64: 32, 96>}, {pipeline_mode = #tpu.pipeline_mode<synchronous>, transform_indices = @transform_4, window_bounds = array<i64: 1, 128>}, {transform_indices = @transform_5, window_bounds = array<i64: 1, 4, 128>}]} {
    %c0_i32 = arith.constant 0 : i32
    %0 = arith.cmpi eq, %arg1, %c0_i32 : i32
    %1 = arith.extui %0 : i1 to i32
    %c0_i32_0 = arith.constant 0 : i32
    %2 = arith.cmpi ne, %1, %c0_i32_0 : i32
    scf.if %2 {
      %c0_19 = arith.constant 0 : index
      %c0_20 = arith.constant 0 : index
      %45 = vector.load %arg3[%c0_19, %c0_20] : memref<4x32xf32, #tpu.memory_space<vmem>>, vector<4x32xf32>
      %c0_21 = arith.constant 0 : index
      %c0_22 = arith.constant 0 : index
      %46 = vector.load %arg8[%c0_21, %c0_22] : memref<4x32xf32, #tpu.memory_space<vmem>>, vector<4x32xf32>
      tpu.vector_store %arg8[%c0_21, %c0_22], %45 {strides = array<i32>} : memref<4x32xf32, #tpu.memory_space<vmem>>, vector<4x32xf32>,
    } else {
    }
    %c0 = arith.constant 0 : index
    %c0_1 = arith.constant 0 : index
    %3 = vector.load %arg8[%c0, %c0_1] : memref<4x32xf32, #tpu.memory_space<vmem>>, vector<4x32xf32>
    %c0_2 = arith.constant 0 : index
    %c0_3 = arith.constant 0 : index
    %c0_4 = arith.constant 0 : index
    %4 = vector.load %arg2[%c0_2, %c0_3, %c0_4] : memref<1x4x16xf32, #tpu.memory_space<vmem>>, vector<1x4x16xf32>
    %5 = vector.shape_cast %4 : vector<1x4x16xf32> to vector<4x16xf32>
    %c0_5 = arith.constant 0 : index
    %c0_6 = arith.constant 0 : index
    %6 = vector.load %arg4[%c0_5, %c0_6] : memref<16x96xf32, #tpu.memory_space<vmem>>, vector<16x96xf32>
    %cst = arith.constant dense<0.000000e+00> : vector<4x96xf32>
    %7 = tpu.matmul %5, %6, %cst {dimension_numbers = #tpu.dot_dimension_numbers<[1], [0], [0], [1], [0, 0, 1, 1], [], []>} : vector<4x16xf32>, vector<16x96xf32>, vector<4x96xf32> -> vector<4x96xf32>
    %c0_7 = arith.constant 0 : index
    %c0_8 = arith.constant 0 : index
    %8 = vector.load %arg5[%c0_7, %c0_8] : memref<32x96xf32, #tpu.memory_space<vmem>>, vector<32x96xf32>
    %cst_9 = arith.constant dense<0.000000e+00> : vector<4x96xf32>
    %9 = tpu.matmul %3, %8, %cst_9 {dimension_numbers = #tpu.dot_dimension_numbers<[1], [0], [0], [1], [0, 0, 1, 1], [], []>} : vector<4x32xf32>, vector<32x96xf32>, vector<4x96xf32> -> vector<4x96xf32>
    %c0_10 = arith.constant 0 : index
    %c0_11 = arith.constant 0 : index
    %10 = vector.load %arg6[%c0_10, %c0_11] : memref<1x128xf32, #tpu.memory_space<vmem>>, vector<1x128xf32>
    %11 = vector.extract_strided_slice %7 {offsets = [0, 0], sizes = [4, 64], strides = [1, 1]} : vector<4x96xf32> to vector<4x64xf32>
    %12 = vector.extract_strided_slice %9 {offsets = [0, 0], sizes = [4, 64], strides = [1, 1]} : vector<4x96xf32> to vector<4x64xf32>
    %13 = arith.addf %11, %12 : vector<4x64xf32>
    %14 = vector.extract_strided_slice %10 {offsets = [0, 0], sizes = [1, 64], strides = [1, 1]} : vector<1x128xf32> to vector<1x64xf32>
    %15 = vector.broadcast %14 : vector<1x64xf32> to vector<4x64xf32>
    %16 = arith.addf %13, %15 : vector<4x64xf32>
    %17 = arith.negf %16 : vector<4x64xf32>
    %18 = math.exp %17 : vector<4x64xf32>
    %cst_12 = arith.constant 1.000000e+00 : f32
    %19 = vector.broadcast %cst_12 : f32 to vector<4x64xf32>
    %20 = arith.addf %19, %18 : vector<4x64xf32>
    %21 = arith.divf %19, %20 : vector<4x64xf32>
    %22 = vector.extract_strided_slice %21 {offsets = [0, 0], sizes = [4, 32], strides = [1, 1]} : vector<4x64xf32> to vector<4x32xf32>
    %23 = vector.extract_strided_slice %21 {offsets = [0, 32], sizes = [4, 32], strides = [1, 1]} : vector<4x64xf32> to vector<4x32xf32>
    %24 = vector.extract_strided_slice %7 {offsets = [0, 64], sizes = [4, 32], strides = [1, 1]} : vector<4x96xf32> to vector<4x32xf32>
    %25 = vector.extract_strided_slice %10 {offsets = [0, 64], sizes = [1, 32], strides = [1, 1]} : vector<1x128xf32> to vector<1x32xf32>
    %26 = vector.broadcast %25 : vector<1x32xf32> to vector<4x32xf32>
    %27 = arith.addf %24, %26 : vector<4x32xf32>
    %28 = vector.extract_strided_slice %9 {offsets = [0, 64], sizes = [4, 32], strides = [1, 1]} : vector<4x96xf32> to vector<4x32xf32>
    %29 = vector.extract_strided_slice %10 {offsets = [0, 96], sizes = [1, 32], strides = [1, 1]} : vector<1x128xf32> to vector<1x32xf32>
    %30 = vector.broadcast %29 : vector<1x32xf32> to vector<4x32xf32>
    %31 = arith.addf %28, %30 : vector<4x32xf32>
    %32 = arith.mulf %22, %31 : vector<4x32xf32>
    %33 = arith.addf %27, %32 : vector<4x32xf32>
    %34 = math.tanh %33 : vector<4x32xf32>
    %cst_13 = arith.constant 1.000000e+00 : f32
    %35 = vector.broadcast %cst_13 : f32 to vector<4x32xf32>
    %36 = arith.subf %35, %23 : vector<4x32xf32>
    %37 = arith.mulf %36, %34 : vector<4x32xf32>
    %38 = arith.mulf %23, %3 : vector<4x32xf32>
    %39 = arith.addf %37, %38 : vector<4x32xf32>
    %c0_14 = arith.constant 0 : index
    %c0_15 = arith.constant 0 : index
    %40 = vector.load %arg8[%c0_14, %c0_15] : memref<4x32xf32, #tpu.memory_space<vmem>>, vector<4x32xf32>
    tpu.vector_store %arg8[%c0_14, %c0_15], %39 {strides = array<i32>} : memref<4x32xf32, #tpu.memory_space<vmem>>, vector<4x32xf32>,
    %41 = tpu.concatenate %22, %23, %34, %39 in 1 : vector<4x32xf32>, vector<4x32xf32>, vector<4x32xf32>, vector<4x32xf32> -> vector<4x128xf32>
    %c0_16 = arith.constant 0 : index
    %c0_17 = arith.constant 0 : index
    %c0_18 = arith.constant 0 : index
    %42 = vector.load %arg7[%c0_16, %c0_17, %c0_18] : memref<1x4x128xf32, #tpu.memory_space<vmem>>, vector<1x4x128xf32>
    %43 = vector.shape_cast %42 : vector<1x4x128xf32> to vector<4x128xf32>
    %44 = vector.shape_cast %41 : vector<4x128xf32> to vector<1x4x128xf32>
    tpu.vector_store %arg7[%c0_16, %c0_17, %c0_18], %44 {strides = array<i32>} : memref<1x4x128xf32, #tpu.memory_space<vmem>>, vector<1x4x128xf32>,
    return
  }
  func.func @transform_0(%arg0: i32, %arg1: i32) -> (i32, i32, i32) {
    %c0_i32 = arith.constant 0 : i32
    %c0_i32_0 = arith.constant 0 : i32
    return %arg1, %arg0, %c0_i32 : i32, i32, i32
  }
  func.func @transform_1(%arg0: i32, %arg1: i32) -> (i32, i32) {
    %c0_i32 = arith.constant 0 : i32
    %c0_i32_0 = arith.constant 0 : i32
    return %arg0, %c0_i32 : i32, i32
  }
  func.func @transform_2(%arg0: i32, %arg1: i32) -> (i32, i32) {
    %c0_i32 = arith.constant 0 : i32
    %c0_i32_0 = arith.constant 0 : i32
    %c0_i32_1 = arith.constant 0 : i32
    return %c0_i32, %c0_i32_0 : i32, i32
  }
  func.func @transform_3(%arg0: i32, %arg1: i32) -> (i32, i32) {
    %c0_i32 = arith.constant 0 : i32
    %c0_i32_0 = arith.constant 0 : i32
    %c0_i32_1 = arith.constant 0 : i32
    return %c0_i32, %c0_i32_0 : i32, i32
  }
  func.func @transform_4(%arg0: i32, %arg1: i32) -> (i32, i32) {
    %c0_i32 = arith.constant 0 : i32
    %c0_i32_0 = arith.constant 0 : i32
    %c0_i32_1 = arith.constant 0 : i32
    return %c0_i32, %c0_i32_0 : i32, i32
  }
  func.func @transform_5(%arg0: i32, %arg1: i32) -> (i32, i32, i32) {
    %c0_i32 = arith.constant 0 : i32
    %c0_i32_0 = arith.constant 0 : i32
    return %arg1, %arg0, %c0_i32 : i32, i32, i32
  }
}

</mosaic_0001>

<llo_original>
// kernel: tpu_custom_call.1
$region0: #{tpu_custom_call.1}
  #allocation0 [shape = 'u32[]', space=smem, size = 0x4, offset = 0x4, fixed_abs, tag = 'smem constant byte address 0x4 - core index']
  #allocation1 [shape = 'u32[144,128]{1,0:T(1,128)}', space=vmem, size = 0x12000, scoped, tag = 'internal scratch']
  #allocation2 [shape = 'f32[4,32]{1,0:T(4,128)}', space=vmem, size = 0x800, scoped, tag = 'scratch operand']
  %s0 = inlined_call_operand.hbm [shape: f32[1,4,16], index: 0, kind: input, shape index: {}]
  %s1 = inlined_call_operand.hbm [shape: f32[4,32], index: 1, kind: input, shape index: {}]
  %s2 = inlined_call_operand.hbm [shape: f32[16,96], index: 2, kind: input, shape index: {}]
  %s3 = inlined_call_operand.hbm [shape: f32[32,96], index: 3, kind: input, shape index: {}]
  %s4 = inlined_call_operand.vmem [shape: f32[1,128], index: 4, kind: input, shape index: {}]
  %s5 = inlined_call_operand.hbm [shape: f32[1,4,128], index: 5, kind: output, shape index: {}]
  %s6 = sld [smem:[#allocation0]]
  $region50: #{tpu_custom_call.1} parent=0
    _
  %s8 = ssub.s32 1, %s6
  %s9 = scalar_select 0, %s8, %s6
  $region1: #{tpu_custom_call.1} parent=0
    #allocation3 [shape = 'u8[2048]{0}', space=vmem, size = 0x800, scoped, tag = 'input window, operand 0, single buffered']
    #allocation4 [shape = 's32[1]{0}', space=sflag, size = 0x4, scoped, tag = 'scoped memory for tpu_custom_call.1']
    #allocation5 [shape = 's32[1]{0}', space=sflag, size = 0x4, scoped, tag = 'scoped memory for tpu_custom_call.1']
    #allocation6 [shape = 'u8[2048]{0}', space=vmem, size = 0x800, scoped, tag = 'input window, operand 1, single buffered']
    #allocation7 [shape = 's32[1]{0}', space=sflag, size = 0x4, scoped, tag = 'scoped memory for tpu_custom_call.1']
    #allocation8 [shape = 'u8[8192]{0}', space=vmem, size = 0x2000, scoped, tag = 'input window, operand 2, single buffered']
    #allocation9 [shape = 'u8[16384]{0}', space=vmem, size = 0x4000, scoped, tag = 'input window, operand 3, single buffered']
    #allocation10 [shape = 's32[1]{0}', space=sflag, size = 0x4, scoped, tag = 'scoped memory for tpu_custom_call.1']
    #allocation11 [shape = 'u8[2048]{0}', space=vmem, size = 0x800, scoped, tag = 'output window, operand 0, single buffered']
    %10 = vsyncpa [#allocation4], 0
    %11 = vsyncpa [#allocation7], 0
    %12 = vsyncpa [#allocation10], 0
    %13 = vsyncpa [#allocation5], 0
    // Predicated region
    $region2: #{tpu_custom_call.1} parent=1 // pred_check
      _
    $region3: #{tpu_custom_call.1} parent=1 // pred_check_branch
      %15 = sbr.rel (0) target = $region5
    $region4: #{tpu_custom_call.1} parent=1 // pred_region
      %s17 = ssub.s32 64, 64
      %18 = vsyncadd [#allocation4], %s17
      %s20 = sshll.u32 [#allocation3], 4
      %s21 = int_to_ptr.vmem [resolvable:$true] %s20
      %23 = dma.hbm_to_vmem [thread:$0]  %s0, 64, %s21, [#allocation4]
    $region5: #{tpu_custom_call.1} parent=1 // pred_fallthru
      _
    // Predicated region
    $region6: #{tpu_custom_call.1} parent=1 // pred_check
      _
    $region7: #{tpu_custom_call.1} parent=1 // pred_check_branch
      %25 = sbr.rel (0) target = $region9
    $region8: #{tpu_custom_call.1} parent=1 // pred_region
      %s27 = ssub.s32 64, 64
      %28 = vsyncadd [#allocation7], %s27
      %s30 = sshll.u32 [#allocation6], 4
      %s31 = int_to_ptr.vmem [resolvable:$true] %s30
      %33 = dma.hbm_to_vmem [thread:$0]  %s1, 64, %s31, [#allocation7]
    $region9: #{tpu_custom_call.1} parent=1 // pred_fallthru
      _
    // Predicated region
    $region10: #{tpu_custom_call.1} parent=1 // pred_check
      _
    $region11: #{tpu_custom_call.1} parent=1 // pred_check_branch
      %35 = sbr.rel (0) target = $region13
    $region12: #{tpu_custom_call.1} parent=1 // pred_region
      %s37 = ssub.s32 256, 256
      %38 = vsyncadd [#allocation7], %s37
      %s39 = sshll.u32 [#allocation8], 4
      %s40 = int_to_ptr.vmem [resolvable:$true] %s39
      %45 = dma.hbm_to_vmem [thread:$0]  %s2, 256, %s40, [#allocation7], 128, 128, 8
    $region13: #{tpu_custom_call.1} parent=1 // pred_fallthru
      _
    // Predicated region
    $region14: #{tpu_custom_call.1} parent=1 // pred_check
      _
    $region15: #{tpu_custom_call.1} parent=1 // pred_check_branch
      %47 = sbr.rel (0) target = $region17
    $region16: #{tpu_custom_call.1} parent=1 // pred_region
      %s49 = ssub.s32 512, 512
      %50 = vsyncadd [#allocation10], %s49
      %s51 = sshll.u32 [#allocation9], 4
      %s52 = int_to_ptr.vmem [resolvable:$true] %s51
      %57 = dma.hbm_to_vmem [thread:$0]  %s3, 512, %s52, [#allocation10], 128, 128, 8
    $region17: #{tpu_custom_call.1} parent=1 // pred_fallthru
      _
    // Predicated region
    $region18: #{tpu_custom_call.1} parent=1 // pred_check
      _
    $region19: #{tpu_custom_call.1} parent=1 // pred_check_branch
      %59 = sbr.rel (0) target = $region21
    $region20: #{tpu_custom_call.1} parent=1 // pred_region
      _
    $region21: #{tpu_custom_call.1} parent=1 // pred_fallthru
      _
    // Predicated region
    $region22: #{tpu_custom_call.1} parent=1 // pred_check
      _
    $region23: #{tpu_custom_call.1} parent=1 // pred_check_branch
      %61 = sbr.rel (0) target = $region25
    $region24: #{tpu_custom_call.1} parent=1 // pred_region
      %62 = dma.done [#allocation4], 64
    $region25: #{tpu_custom_call.1} parent=1 // pred_fallthru
      _
    // Predicated region
    $region26: #{tpu_custom_call.1} parent=1 // pred_check
      _
    $region27: #{tpu_custom_call.1} parent=1 // pred_check_branch
      %64 = sbr.rel (0) target = $region29
    $region28: #{tpu_custom_call.1} parent=1 // pred_region
      %65 = dma.done [#allocation7], 64
    $region29: #{tpu_custom_call.1} parent=1 // pred_fallthru
      _
    // Predicated region
    $region30: #{tpu_custom_call.1} parent=1 // pred_check
      _
    $region31: #{tpu_custom_call.1} parent=1 // pred_check_branch
      %67 = sbr.rel (0) target = $region33
    $region32: #{tpu_custom_call.1} parent=1 // pred_region
      %68 = dma.done [#allocation7], 256
    $region33: #{tpu_custom_call.1} parent=1 // pred_fallthru
      _
    // Predicated region
    $region34: #{tpu_custom_call.1} parent=1 // pred_check
      _
    $region35: #{tpu_custom_call.1} parent=1 // pred_check_branch
      %70 = sbr.rel (0) target = $region37
    $region36: #{tpu_custom_call.1} parent=1 // pred_region
      %71 = dma.done [#allocation10], 512
    $region37: #{tpu_custom_call.1} parent=1 // pred_fallthru
      _
    %p72 = scmp.eq.s32.totalorder 0, 0
    // Predicated region
    $region38: #{tpu_custom_call.1} parent=1 // pred_check
      %p73 = pneg %p72
    $region39: #{tpu_custom_call.1} parent=1 // pred_check_branch
      %75 = sbr.rel (%p73) target = $region41
    $region40: #{tpu_custom_call.1} parent=1 // pred_region
      %v76 = vld [vmem:[#allocation6] sm:$0xf]
      %vm77 = vcmask 257024
      %78 = vst.msk [vmem:[#allocation2] sm:$0xf] %vm77, %v76
    $region41: #{tpu_custom_call.1} parent=1 // pred_fallthru
      _
    %v79 = vld [vmem:[#allocation2] sm:$0xf]
    %v80 = vld [vmem:[#allocation3] sm:$0xf]
    %v81 = vld [vmem:[#allocation8] sm:$0xff]
    %v82 = vld [vmem:[#allocation8 + $0x8] sm:$0xff]
    %vm83 = vcmask 130048
    %v85 = vsel %vm83, %v80, 0
    %87 = vmatprep.subr.mxu0 0.0
    %88 = vmatpush1.msra.mxu0 %v81
    %89 = vmatprep.subr.mxu0 0.0
    %90 = vmatpush1.msra.mxu0 %v82
    %91 = vmatprep.subr.mxu0 0.0
    %92 = vmatpush1.msra.mxu0 0.0
    %93 = vmatprep.subr.mxu0 0.0
    %94 = vmatpush1.msra.mxu0 0.0
    %95 = vmatprep.subr.mxu0 0.0
    %96 = vmatpush1.msra.mxu0 0.0
    %97 = vmatprep.subr.mxu0 0.0
    %98 = vmatpush1.msra.mxu0 0.0
    %99 = vmatprep.subr.mxu0 0.0
    %100 = vmatpush1.msra.mxu0 0.0
    %101 = vmatprep.subr.mxu0 0.0
    %102 = vmatpush1.msra.mxu0 0.0
    %103 = vmatprep.subr.mxu0 0.0
    %104 = vmatpush1.msra.mxu0 0.0
    %105 = vmatprep.subr.mxu0 0.0
    %106 = vmatpush1.msra.mxu0 0.0
    %107 = vmatprep.subr.mxu0 0.0
    %108 = vmatpush1.msra.mxu0 0.0
    %109 = vmatprep.subr.mxu0 0.0
    %110 = vmatpush1.msra.mxu0 0.0
    %111 = vmatprep.subr.mxu0 0.0
    %112 = vmatpush1.msra.mxu0 0.0
    %113 = vmatprep.subr.mxu0 0.0
    %114 = vmatpush1.msra.mxu0 0.0
    %115 = vmatprep.subr.mxu0 0.0
    %116 = vmatpush1.msra.mxu0 0.0
    %117 = vmatprep.subr.mxu0 0.0
    %118 = vmatpush1.msra.mxu0 0.0
    %119 = vmatprep.subr.mxu0 0.0
    %120 = vmatpush1.msra.mxu0 0.0
    %121 = vmatprep.subr.mxu0 0.0
    %122 = vmatpush1.msra.mxu0 0.0
    %123 = vmatprep.subr.mxu0 0.0
    %124 = vmatpush1.msra.mxu0 0.0
    %125 = vmatprep.subr.mxu0 0.0
    %126 = vmatpush1.msra.mxu0 0.0
    %127 = vmatprep.subr.mxu0 0.0
    %128 = vmatpush1.msra.mxu0 0.0
    %129 = vmatprep.subr.mxu0 0.0
    %130 = vmatpush1.msra.mxu0 0.0
    %131 = vmatprep.subr.mxu0 0.0
    %132 = vmatpush1.msra.mxu0 0.0
    %133 = vmatprep.subr.mxu0 0.0
    %134 = vmatpush1.msra.mxu0 0.0
    %135 = vmatprep.subr.mxu0 0.0
    %136 = vmatpush1.msra.mxu0 0.0
    %137 = vmatprep.subr.mxu0 0.0
    %138 = vmatpush1.msra.mxu0 0.0
    %139 = vmatprep.subr.mxu0 0.0
    %140 = vmatpush1.msra.mxu0 0.0
    %141 = vmatprep.subr.mxu0 0.0
    %142 = vmatpush1.msra.mxu0 0.0
    %143 = vmatprep.subr.mxu0 0.0
    %144 = vmatpush1.msra.mxu0 0.0
    %145 = vmatprep.subr.mxu0 0.0
    %146 = vmatpush1.msra.mxu0 0.0
    %147 = vmatprep.subr.mxu0 0.0
    %148 = vmatpush1.msra.mxu0 0.0
    %149 = vmatprep.subr.mxu0 0.0
    %150 = vmatpush1.msra.mxu0 0.0
    %151 = vmatprep.mubr.f32.mxu0 0.0
    %152 = vmatmul.mubr.f32.gmra.mrb[0].mxu0 %v85
    %v153 = vpop.f32.mrb[0].mxu0
    %v154 = vadd.f32 0.0, %v153
    %v155 = vpop.f32.mrb[0].mxu0
    %156 = vdwg.mxu0
    %v157 = vld [vmem:[#allocation9] sm:$0xff]
    %v158 = vld [vmem:[#allocation9 + $0x8] sm:$0xff]
    %v159 = vld [vmem:[#allocation9 + $0x10] sm:$0xff]
    %v160 = vld [vmem:[#allocation9 + $0x18] sm:$0xff]
    %vm161 = vcmask 261120
    %v163 = vsel %vm161, %v79, 0
    %165 = vmatprep.subr.mxu0 0.0
    %166 = vmatpush1.msra.mxu0 %v157
    %167 = vmatprep.subr.mxu0 0.0
    %168 = vmatpush1.msra.mxu0 %v158
    %169 = vmatprep.subr.mxu0 0.0
    %170 = vmatpush1.msra.mxu0 %v159
    %171 = vmatprep.subr.mxu0 0.0
    %172 = vmatpush1.msra.mxu0 %v160
    %173 = vmatprep.subr.mxu0 0.0
    %174 = vmatpush1.msra.mxu0 0.0
    %175 = vmatprep.subr.mxu0 0.0
    %176 = vmatpush1.msra.mxu0 0.0
    %177 = vmatprep.subr.mxu0 0.0
    %178 = vmatpush1.msra.mxu0 0.0
    %179 = vmatprep.subr.mxu0 0.0
    %180 = vmatpush1.msra.mxu0 0.0
    %181 = vmatprep.subr.mxu0 0.0
    %182 = vmatpush1.msra.mxu0 0.0
    %183 = vmatprep.subr.mxu0 0.0
    %184 = vmatpush1.msra.mxu0 0.0
    %185 = vmatprep.subr.mxu0 0.0
    %186 = vmatpush1.msra.mxu0 0.0
    %187 = vmatprep.subr.mxu0 0.0
    %188 = vmatpush1.msra.mxu0 0.0
    %189 = vmatprep.subr.mxu0 0.0
    %190 = vmatpush1.msra.mxu0 0.0
    %191 = vmatprep.subr.mxu0 0.0
    %192 = vmatpush1.msra.mxu0 0.0
    %193 = vmatprep.subr.mxu0 0.0
    %194 = vmatpush1.msra.mxu0 0.0
    %195 = vmatprep.subr.mxu0 0.0
    %196 = vmatpush1.msra.mxu0 0.0
    %197 = vmatprep.subr.mxu0 0.0
    %198 = vmatpush1.msra.mxu0 0.0
    %199 = vmatprep.subr.mxu0 0.0
    %200 = vmatpush1.msra.mxu0 0.0
    %201 = vmatprep.subr.mxu0 0.0
    %202 = vmatpush1.msra.mxu0 0.0
    %203 = vmatprep.subr.mxu0 0.0
    %204 = vmatpush1.msra.mxu0 0.0
    %205 = vmatprep.subr.mxu0 0.0
    %206 = vmatpush1.msra.mxu0 0.0
    %207 = vmatprep.subr.mxu0 0.0
    %208 = vmatpush1.msra.mxu0 0.0
    %209 = vmatprep.subr.mxu0 0.0
    %210 = vmatpush1.msra.mxu0 0.0
    %211 = vmatprep.subr.mxu0 0.0
    %212 = vmatpush1.msra.mxu0 0.0
    %213 = vmatprep.subr.mxu0 0.0
    %214 = vmatpush1.msra.mxu0 0.0
    %215 = vmatprep.subr.mxu0 0.0
    %216 = vmatpush1.msra.mxu0 0.0
    %217 = vmatprep.subr.mxu0 0.0
    %218 = vmatpush1.msra.mxu0 0.0
    %219 = vmatprep.subr.mxu0 0.0
    %220 = vmatpush1.msra.mxu0 0.0
    %221 = vmatprep.subr.mxu0 0.0
    %222 = vmatpush1.msra.mxu0 0.0
    %223 = vmatprep.subr.mxu0 0.0
    %224 = vmatpush1.msra.mxu0 0.0
    %225 = vmatprep.subr.mxu0 0.0
    %226 = vmatpush1.msra.mxu0 0.0
    %227 = vmatprep.subr.mxu0 0.0
    %228 = vmatpush1.msra.mxu0 0.0
    %229 = vmatprep.mubr.f32.mxu0 0.0
    %230 = vmatmul.mubr.f32.gmra.mrb[0].mxu0 %v163
    %v231 = vpop.f32.mrb[0].mxu0
    %v232 = vadd.f32 0.0, %v231
    %v233 = vpop.f32.mrb[0].mxu0
    %234 = vdwg.mxu0
    %v235 = vld [vmem:[%s4] sm:$0x1]
    %v236 = vadd.f32 %v154, %v232
    %v238 = vlaneseq
    %v239 = vshrl.u32 %v238, 7
    %v240 = vsub.s32 0, %v239
    %v241 = vrot.slane %v235, %v240
    %v243 = vadd.f32 %v236, %v241
    %v244 = vxor.u32 %v243, 2147483648
    %v245 = vmul.f32 %v244, 1.442695
    %v246 = vpow.pop %v245
    %v247 = vadd.f32 %v246, 1.0
    %v248 = vrcp.pop %v247
    %v249 = vmul.f32 1.0, %v248
    %v250 = vadd.f32 %v154, %v241
    %251 = vrot.lane.b32.xlu0 %v241, 96
    %v252 = vpop.permute.xlu0 %251
    %v254 = vadd.f32 %v232, %v252
    %256 = vrot.lane.b32.xlu0 %v254, 64
    %v257 = vpop.permute.xlu0 %256
    %v259 = vmul.f32 %v249, %v257
    %261 = vrot.lane.b32.xlu0 %v259, 64
    %v262 = vpop.permute.xlu0 %261
    %v264 = vadd.f32 %v250, %v262
    %v265 = vtanh.pop %v264
    %v266 = vsub.f32 1.0, %v249
    %268 = vrot.lane.b32.xlu0 %v265, 96
    %v269 = vpop.permute.xlu0 %268
    %v271 = vmul.f32 %v266, %v269
    %272 = vrot.lane.b32.xlu0 %v79, 32
    %v273 = vpop.permute.xlu0 %272
    %v275 = vmul.f32 %v249, %v273
    %v276 = vadd.f32 %v271, %v275
    %278 = vrot.lane.b32.xlu0 %v276, 96
    %v279 = vpop.permute.xlu0 %278
    %vm281 = vcmask 257024
    %282 = vst.msk [vmem:[#allocation2] sm:$0xf] %vm281, %v279
    %283 = vrot.lane.b32.xlu0 %v276, 64
    %v284 = vpop.permute.xlu0 %283
    %vm286 = vcmask 523264
    %v287 = vsel %vm286, %v249, %v265
    %vm288 = vcmask 785408
    %v289 = vsel %vm288, %v287, %v284
    %290 = vst [vmem:[#allocation11] sm:$0xf] %v289
    // Predicated region
    $region42: #{tpu_custom_call.1} parent=1 // pred_check
      _
    $region43: #{tpu_custom_call.1} parent=1 // pred_check_branch
      %292 = sbr.rel (0) target = $region45
    $region44: #{tpu_custom_call.1} parent=1 // pred_region
      %s294 = ssub.s32 64, 64
      %295 = vsyncadd [#allocation5], %s294
      %s297 = sshll.u32 [#allocation11], 4
      %s298 = int_to_ptr.vmem [resolvable:$true] %s297
      %300 = dma.vmem_to_hbm [thread:$0]  %s298, 64, %s5, [#allocation5]
    $region45: #{tpu_custom_call.1} parent=1 // pred_fallthru
      _
    // Predicated region
    $region46: #{tpu_custom_call.1} parent=1 // pred_check
      _
    $region47: #{tpu_custom_call.1} parent=1 // pred_check_branch
      %302 = sbr.rel (0) target = $region49
    $region48: #{tpu_custom_call.1} parent=1 // pred_region
      %303 = dma.done [#allocation5], 64
    $region49: #{tpu_custom_call.1} parent=1 // pred_fallthru
      _
    %304 = vsyncpa [#allocation4], 1
    %305 = vsyncpa [#allocation7], 1
    %306 = vsyncpa [#allocation10], 1
    %307 = vsyncpa [#allocation5], 1

// kernel: tpu_custom_call.1
$region0: #{tpu_custom_call.1}
  #allocation0 [shape = 'u32[]', space=smem, size = 0x4, offset = 0x4, fixed_abs, tag = 'smem constant byte address 0x4 - core index']
  #allocation1 [shape = 'u32[144,128]{1,0:T(1,128)}', space=vmem, size = 0x12000, scoped, tag = 'internal scratch']
  #allocation2 [shape = 'f32[4,32]{1,0:T(4,128)}', space=vmem, size = 0x800, scoped, tag = 'scratch operand']
  %s0 = inlined_call_operand.hbm [shape: f32[1,4,16], index: 0, kind: input, shape index: {}]
  %s1 = inlined_call_operand.hbm [shape: f32[4,32], index: 1, kind: input, shape index: {}]
  %s2 = inlined_call_operand.hbm [shape: f32[16,96], index: 2, kind: input, shape index: {}]
  %s3 = inlined_call_operand.hbm [shape: f32[32,96], index: 3, kind: input, shape index: {}]
  %s4 = inlined_call_operand.vmem [shape: f32[1,128], index: 4, kind: input, shape index: {}]
  %s5 = inlined_call_operand.hbm [shape: f32[1,4,128], index: 5, kind: output, shape index: {}]
  %s6 = sld [smem:[#allocation0]]
  $region50: #{tpu_custom_call.1} parent=0
    _
  %s8 = ssub.s32 1, %s6
  %s9 = scalar_select 0, %s8, %s6
  $region1: #{tpu_custom_call.1} parent=0
    #allocation3 [shape = 'u8[2048]{0}', space=vmem, size = 0x800, scoped, tag = 'input window, operand 0, single buffered']
    #allocation4 [shape = 's32[1]{0}', space=sflag, size = 0x4, scoped, tag = 'scoped memory for tpu_custom_call.1']
    #allocation5 [shape = 's32[1]{0}', space=sflag, size = 0x4, scoped, tag = 'scoped memory for tpu_custom_call.1']
    #allocation6 [shape = 'u8[2048]{0}', space=vmem, size = 0x800, scoped, tag = 'input window, operand 1, single buffered']
    #allocation7 [shape = 's32[1]{0}', space=sflag, size = 0x4, scoped, tag = 'scoped memory for tpu_custom_call.1']
    #allocation8 [shape = 'u8[8192]{0}', space=vmem, size = 0x2000, scoped, tag = 'input window, operand 2, single buffered']
    #allocation9 [shape = 'u8[16384]{0}', space=vmem, size = 0x4000, scoped, tag = 'input window, operand 3, single buffered']
    #allocation10 [shape = 's32[1]{0}', space=sflag, size = 0x4, scoped, tag = 'scoped memory for tpu_custom_call.1']
    #allocation11 [shape = 'u8[2048]{0}', space=vmem, size = 0x800, scoped, tag = 'output window, operand 0, single buffered']
    %10 = vsyncpa [#allocation4], 0
    %11 = vsyncpa [#allocation7], 0
    %12 = vsyncpa [#allocation10], 0
    %13 = vsyncpa [#allocation5], 0
    // Predicated region
    $region2: #{tpu_custom_call.1} parent=1 // pred_check
      _
    $region3: #{tpu_custom_call.1} parent=1 // pred_check_branch
      %15 = sbr.rel (0) target = $region5
    $region4: #{tpu_custom_call.1} parent=1 // pred_region
      %s17 = ssub.s32 64, 64
      %18 = vsyncadd [#allocation4], %s17
      %s20 = sshll.u32 [#allocation3], 4
      %s21 = int_to_ptr.vmem [resolvable:$true] %s20
      %23 = dma.hbm_to_vmem [thread:$0]  %s0, 64, %s21, [#allocation4]
    $region5: #{tpu_custom_call.1} parent=1 // pred_fallthru
      _
    // Predicated region
    $region6: #{tpu_custom_call.1} parent=1 // pred_check
      _
    $region7: #{tpu_custom_call.1} parent=1 // pred_check_branch
      %25 = sbr.rel (0) target = $region9
    $region8: #{tpu_custom_call.1} parent=1 // pred_region
      %s27 = ssub.s32 64, 64
      %28 = vsyncadd [#allocation7], %s27
      %s30 = sshll.u32 [#allocation6], 4
      %s31 = int_to_ptr.vmem [resolvable:$true] %s30
      %33 = dma.hbm_to_vmem [thread:$0]  %s1, 64, %s31, [#allocation7]
    $region9: #{tpu_custom_call.1} parent=1 // pred_fallthru
      _
    // Predicated region
    $region10: #{tpu_custom_call.1} parent=1 // pred_check
      _
    $region11: #{tpu_custom_call.1} parent=1 // pred_check_branch
      %35 = sbr.rel (0) target = $region13
    $region12: #{tpu_custom_call.1} parent=1 // pred_region
      %s37 = ssub.s32 256, 256
      %38 = vsyncadd [#allocation7], %s37
      %s39 = sshll.u32 [#allocation8], 4
      %s40 = int_to_ptr.vmem [resolvable:$true] %s39
      %45 = dma.hbm_to_vmem [thread:$0]  %s2, 256, %s40, [#allocation7], 128, 128, 8
    $region13: #{tpu_custom_call.1} parent=1 // pred_fallthru
      _
    // Predicated region
    $region14: #{tpu_custom_call.1} parent=1 // pred_check
      _
    $region15: #{tpu_custom_call.1} parent=1 // pred_check_branch
      %47 = sbr.rel (0) target = $region17
    $region16: #{tpu_custom_call.1} parent=1 // pred_region
      %s49 = ssub.s32 512, 512
      %50 = vsyncadd [#allocation10], %s49
      %s51 = sshll.u32 [#allocation9], 4
      %s52 = int_to_ptr.vmem [resolvable:$true] %s51
      %57 = dma.hbm_to_vmem [thread:$0]  %s3, 512, %s52, [#allocation10], 128, 128, 8
    $region17: #{tpu_custom_call.1} parent=1 // pred_fallthru
      _
    // Predicated region
    $region18: #{tpu_custom_call.1} parent=1 // pred_check
      _
    $region19: #{tpu_custom_call.1} parent=1 // pred_check_branch
      %59 = sbr.rel (0) target = $region21
    $region20: #{tpu_custom_call.1} parent=1 // pred_region
      _
    $region21: #{tpu_custom_call.1} parent=1 // pred_fallthru
      _
    // Predicated region
    $region22: #{tpu_custom_call.1} parent=1 // pred_check
      _
    $region23: #{tpu_custom_call.1} parent=1 // pred_check_branch
      %61 = sbr.rel (0) target = $region25
    $region24: #{tpu_custom_call.1} parent=1 // pred_region
      %62 = dma.done [#allocation4], 64
    $region25: #{tpu_custom_call.1} parent=1 // pred_fallthru
      _
    // Predicated region
    $region26: #{tpu_custom_call.1} parent=1 // pred_check
      _
    $region27: #{tpu_custom_call.1} parent=1 // pred_check_branch
      %64 = sbr.rel (0) target = $region29
    $region28: #{tpu_custom_call.1} parent=1 // pred_region
      %65 = dma.done [#allocation7], 64
    $region29: #{tpu_custom_call.1} parent=1 // pred_fallthru
      _
    // Predicated region
    $region30: #{tpu_custom_call.1} parent=1 // pred_check
      _
    $region31: #{tpu_custom_call.1} parent=1 // pred_check_branch
      %67 = sbr.rel (0) target = $region33
    $region32: #{tpu_custom_call.1} parent=1 // pred_region
      %68 = dma.done [#allocation7], 256
    $region33: #{tpu_custom_call.1} parent=1 // pred_fallthru
      _
    // Predicated region
    $region34: #{tpu_custom_call.1} parent=1 // pred_check
      _
    $region35: #{tpu_custom_call.1} parent=1 // pred_check_branch
      %70 = sbr.rel (0) target = $region37
    $region36: #{tpu_custom_call.1} parent=1 // pred_region
      %71 = dma.done [#allocation10], 512
    $region37: #{tpu_custom_call.1} parent=1 // pred_fallthru
      _
    %p72 = scmp.eq.s32.totalorder 0, 0
    // Predicated region
    $region38: #{tpu_custom_call.1} parent=1 // pred_check
      %p73 = pneg %p72
    $region39: #{tpu_custom_call.1} parent=1 // pred_check_branch
      %75 = sbr.rel (%p73) target = $region41
    $region40: #{tpu_custom_call.1} parent=1 // pred_region
      %v76 = vld [vmem:[#allocation6] sm:$0xf]
      %vm77 = vcmask 257024
      %78 = vst.msk [vmem:[#allocation2] sm:$0xf] %vm77, %v76
    $region41: #{tpu_custom_call.1} parent=1 // pred_fallthru
      _
    %v79 = vld [vmem:[#allocation2] sm:$0xf]
    %v80 = vld [vmem:[#allocation3] sm:$0xf]
    %v81 = vld [vmem:[#allocation8] sm:$0xff]
    %v82 = vld [vmem:[#allocation8 + $0x8] sm:$0xff]
    %vm83 = vcmask 130048
    %v85 = vsel %vm83, %v80, 0
    %87 = vmatprep.subr.mxu0 0.0
    %88 = vmatpush1.msra.mxu0 %v81
    %89 = vmatprep.subr.mxu0 0.0
    %90 = vmatpush1.msra.mxu0 %v82
    %91 = vmatprep.subr.mxu0 0.0
    %92 = vmatpush1.msra.mxu0 0.0
    %93 = vmatprep.subr.mxu0 0.0
    %94 = vmatpush1.msra.mxu0 0.0
    %95 = vmatprep.subr.mxu0 0.0
    %96 = vmatpush1.msra.mxu0 0.0
    %97 = vmatprep.subr.mxu0 0.0
    %98 = vmatpush1.msra.mxu0 0.0
    %99 = vmatprep.subr.mxu0 0.0
    %100 = vmatpush1.msra.mxu0 0.0
    %101 = vmatprep.subr.mxu0 0.0
    %102 = vmatpush1.msra.mxu0 0.0
    %103 = vmatprep.subr.mxu0 0.0
    %104 = vmatpush1.msra.mxu0 0.0
    %105 = vmatprep.subr.mxu0 0.0
    %106 = vmatpush1.msra.mxu0 0.0
    %107 = vmatprep.subr.mxu0 0.0
    %108 = vmatpush1.msra.mxu0 0.0
    %109 = vmatprep.subr.mxu0 0.0
    %110 = vmatpush1.msra.mxu0 0.0
    %111 = vmatprep.subr.mxu0 0.0
    %112 = vmatpush1.msra.mxu0 0.0
    %113 = vmatprep.subr.mxu0 0.0
    %114 = vmatpush1.msra.mxu0 0.0
    %115 = vmatprep.subr.mxu0 0.0
    %116 = vmatpush1.msra.mxu0 0.0
    %117 = vmatprep.subr.mxu0 0.0
    %118 = vmatpush1.msra.mxu0 0.0
    %119 = vmatprep.subr.mxu0 0.0
    %120 = vmatpush1.msra.mxu0 0.0
    %121 = vmatprep.subr.mxu0 0.0
    %122 = vmatpush1.msra.mxu0 0.0
    %123 = vmatprep.subr.mxu0 0.0
    %124 = vmatpush1.msra.mxu0 0.0
    %125 = vmatprep.subr.mxu0 0.0
    %126 = vmatpush1.msra.mxu0 0.0
    %127 = vmatprep.subr.mxu0 0.0
    %128 = vmatpush1.msra.mxu0 0.0
    %129 = vmatprep.subr.mxu0 0.0
    %130 = vmatpush1.msra.mxu0 0.0
    %131 = vmatprep.subr.mxu0 0.0
    %132 = vmatpush1.msra.mxu0 0.0
    %133 = vmatprep.subr.mxu0 0.0
    %134 = vmatpush1.msra.mxu0 0.0
    %135 = vmatprep.subr.mxu0 0.0
    %136 = vmatpush1.msra.mxu0 0.0
    %137 = vmatprep.subr.mxu0 0.0
    %138 = vmatpush1.msra.mxu0 0.0
    %139 = vmatprep.subr.mxu0 0.0
    %140 = vmatpush1.msra.mxu0 0.0
    %141 = vmatprep.subr.mxu0 0.0
    %142 = vmatpush1.msra.mxu0 0.0
    %143 = vmatprep.subr.mxu0 0.0
    %144 = vmatpush1.msra.mxu0 0.0
    %145 = vmatprep.subr.mxu0 0.0
    %146 = vmatpush1.msra.mxu0 0.0
    %147 = vmatprep.subr.mxu0 0.0
    %148 = vmatpush1.msra.mxu0 0.0
    %149 = vmatprep.subr.mxu0 0.0
    %150 = vmatpush1.msra.mxu0 0.0
    %151 = vmatprep.mubr.f32.mxu0 0.0
    %152 = vmatmul.mubr.f32.gmra.mrb[0].mxu0 %v85
    %v153 = vpop.f32.mrb[0].mxu0
    %v154 = vadd.f32 0.0, %v153
    %v155 = vpop.f32.mrb[0].mxu0
    %156 = vdwg.mxu0
    %v157 = vld [vmem:[#allocation9] sm:$0xff]
    %v158 = vld [vmem:[#allocation9 + $0x8] sm:$0xff]
    %v159 = vld [vmem:[#allocation9 + $0x10] sm:$0xff]
    %v160 = vld [vmem:[#allocation9 + $0x18] sm:$0xff]
    %vm161 = vcmask 261120
    %v163 = vsel %vm161, %v79, 0
    %165 = vmatprep.subr.mxu0 0.0
    %166 = vmatpush1.msra.mxu0 %v157
    %167 = vmatprep.subr.mxu0 0.0
    %168 = vmatpush1.msra.mxu0 %v158
    %169 = vmatprep.subr.mxu0 0.0
    %170 = vmatpush1.msra.mxu0 %v159
    %171 = vmatprep.subr.mxu0 0.0
    %172 = vmatpush1.msra.mxu0 %v160
    %173 = vmatprep.subr.mxu0 0.0
    %174 = vmatpush1.msra.mxu0 0.0
    %175 = vmatprep.subr.mxu0 0.0
    %176 = vmatpush1.msra.mxu0 0.0
    %177 = vmatprep.subr.mxu0 0.0
    %178 = vmatpush1.msra.mxu0 0.0
    %179 = vmatprep.subr.mxu0 0.0
    %180 = vmatpush1.msra.mxu0 0.0
    %181 = vmatprep.subr.mxu0 0.0
    %182 = vmatpush1.msra.mxu0 0.0
    %183 = vmatprep.subr.mxu0 0.0
    %184 = vmatpush1.msra.mxu0 0.0
    %185 = vmatprep.subr.mxu0 0.0
    %186 = vmatpush1.msra.mxu0 0.0
    %187 = vmatprep.subr.mxu0 0.0
    %188 = vmatpush1.msra.mxu0 0.0
    %189 = vmatprep.subr.mxu0 0.0
    %190 = vmatpush1.msra.mxu0 0.0
    %191 = vmatprep.subr.mxu0 0.0
    %192 = vmatpush1.msra.mxu0 0.0
    %193 = vmatprep.subr.mxu0 0.0
    %194 = vmatpush1.msra.mxu0 0.0
    %195 = vmatprep.subr.mxu0 0.0
    %196 = vmatpush1.msra.mxu0 0.0
    %197 = vmatprep.subr.mxu0 0.0
    %198 = vmatpush1.msra.mxu0 0.0
    %199 = vmatprep.subr.mxu0 0.0
    %200 = vmatpush1.msra.mxu0 0.0
    %201 = vmatprep.subr.mxu0 0.0
    %202 = vmatpush1.msra.mxu0 0.0
    %203 = vmatprep.subr.mxu0 0.0
    %204 = vmatpush1.msra.mxu0 0.0
    %205 = vmatprep.subr.mxu0 0.0
    %206 = vmatpush1.msra.mxu0 0.0
    %207 = vmatprep.subr.mxu0 0.0
    %208 = vmatpush1.msra.mxu0 0.0
    %209 = vmatprep.subr.mxu0 0.0
    %210 = vmatpush1.msra.mxu0 0.0
    %211 = vmatprep.subr.mxu0 0.0
    %212 = vmatpush1.msra.mxu0 0.0
    %213 = vmatprep.subr.mxu0 0.0
    %214 = vmatpush1.msra.mxu0 0.0
    %215 = vmatprep.subr.mxu0 0.0
    %216 = vmatpush1.msra.mxu0 0.0
    %217 = vmatprep.subr.mxu0 0.0
    %218 = vmatpush1.msra.mxu0 0.0
    %219 = vmatprep.subr.mxu0 0.0
    %220 = vmatpush1.msra.mxu0 0.0
    %221 = vmatprep.subr.mxu0 0.0
    %222 = vmatpush1.msra.mxu0 0.0
    %223 = vmatprep.subr.mxu0 0.0
    %224 = vmatpush1.msra.mxu0 0.0
    %225 = vmatprep.subr.mxu0 0.0
    %226 = vmatpush1.msra.mxu0 0.0
    %227 = vmatprep.subr.mxu0 0.0
    %228 = vmatpush1.msra.mxu0 0.0
    %229 = vmatprep.mubr.f32.mxu0 0.0
    %230 = vmatmul.mubr.f32.gmra.mrb[0].mxu0 %v163
    %v231 = vpop.f32.mrb[0].mxu0
    %v232 = vadd.f32 0.0, %v231
    %v233 = vpop.f32.mrb[0].mxu0
    %234 = vdwg.mxu0
    %v235 = vld [vmem:[%s4] sm:$0x1]
    %v236 = vadd.f32 %v154, %v232
    %v238 = vlaneseq
    %v239 = vshrl.u32 %v238, 7
    %v240 = vsub.s32 0, %v239
    %v241 = vrot.slane %v235, %v240
    %v243 = vadd.f32 %v236, %v241
    %v244 = vxor.u32 %v243, 2147483648
    %v245 = vmul.f32 %v244, 1.442695
    %v246 = vpow.pop %v245
    %v247 = vadd.f32 %v246, 1.0
    %v248 = vrcp.pop %v247
    %v249 = vmul.f32 1.0, %v248
    %v250 = vadd.f32 %v154, %v241
    %251 = vrot.lane.b32.xlu0 %v241, 96
    %v252 = vpop.permute.xlu0 %251
    %v254 = vadd.f32 %v232, %v252
    %256 = vrot.lane.b32.xlu0 %v254, 64
    %v257 = vpop.permute.xlu0 %256
    %v259 = vmul.f32 %v249, %v257
    %261 = vrot.lane.b32.xlu0 %v259, 64
    %v262 = vpop.permute.xlu0 %261
    %v264 = vadd.f32 %v250, %v262
    %v265 = vtanh.pop %v264
    %v266 = vsub.f32 1.0, %v249
    %268 = vrot.lane.b32.xlu0 %v265, 96
    %v269 = vpop.permute.xlu0 %268
    %v271 = vmul.f32 %v266, %v269
    %272 = vrot.lane.b32.xlu0 %v79, 32
    %v273 = vpop.permute.xlu0 %272
    %v275 = vmul.f32 %v249, %v273
    %v276 = vadd.f32 %v271, %v275
    %278 = vrot.lane.b32.xlu0 %v276, 96
    %v279 = vpop.permute.xlu0 %278
    %vm281 = vcmask 257024
    %282 = vst.msk [vmem:[#allocation2] sm:$0xf] %vm281, %v279
    %283 = vrot.lane.b32.xlu0 %v276, 64
    %v284 = vpop.permute.xlu0 %283
    %vm286 = vcmask 523264
    %v287 = vsel %vm286, %v249, %v265
    %vm288 = vcmask 785408
    %v289 = vsel %vm288, %v287, %v284
    %290 = vst [vmem:[#allocation11] sm:$0xf] %v289
    // Predicated region
    $region42: #{tpu_custom_call.1} parent=1 // pred_check
      _
    $region43: #{tpu_custom_call.1} parent=1 // pred_check_branch
      %292 = sbr.rel (0) target = $region45
    $region44: #{tpu_custom_call.1} parent=1 // pred_region
      %s294 = ssub.s32 64, 64
      %295 = vsyncadd [#allocation5], %s294
      %s297 = sshll.u32 [#allocation11], 4
      %s298 = int_to_ptr.vmem [resolvable:$true] %s297
      %300 = dma.vmem_to_hbm [thread:$0]  %s298, 64, %s5, [#allocation5]
    $region45: #{tpu_custom_call.1} parent=1 // pred_fallthru
      _
    // Predicated region
    $region46: #{tpu_custom_call.1} parent=1 // pred_check
      _
    $region47: #{tpu_custom_call.1} parent=1 // pred_check_branch
      %302 = sbr.rel (0) target = $region49
    $region48: #{tpu_custom_call.1} parent=1 // pred_region
      %303 = dma.done [#allocation5], 64
    $region49: #{tpu_custom_call.1} parent=1 // pred_fallthru
      _
    %304 = vsyncpa [#allocation4], 1
    %305 = vsyncpa [#allocation7], 1
    %306 = vsyncpa [#allocation10], 1
    %307 = vsyncpa [#allocation5], 1

</llo_original>
